<compile_context>
chip_gen: v5e
topology: v5e:2x2
jax: 0.10.0
libtpu: 0.0.40
codegen_flags: <defaults>
</compile_context>

<pallas_src>
import math

import jax
import jax.numpy as jnp
from jax.experimental import pallas as pl
from jax.experimental.pallas import tpu as pltpu


def _attn_dropout_kernel(q_ref, k_ref, v_ref, mask_ref, o_ref):
    # Block refs are (Bblk, L, D) tiles; one grid step handles Bblk batch rows.
    q = q_ref[...]           # (Bb, Lq, D)  f32
    k = k_ref[...]           # (Bb, Lk, D)  f32
    v = v_ref[...]           # (Bb, Lk, Dv) f32
    keep = mask_ref[...]     # (Bb, Lq, Lk) f32 in {0, 1}

    lk = k.shape[1]
    # PyTorch: scaled_qk = qk / rsqrt(Lk) == qk * sqrt(Lk). Fold the scale into q
    # (cheaper: Lq*D multiplies instead of Lq*Lk), then cast to bf16 for the MXU.
    scale = jnp.float32(math.sqrt(float(lk)))
    q_s = (q * scale).astype(jnp.bfloat16)
    k_b = k.astype(jnp.bfloat16)

    # s = q @ k^T — contract the feature dim directly (no explicit transpose),
    # accumulate in f32 on the MXU.
    s = jnp.einsum("bqd,bkd->bqk", q_s, k_b, preferred_element_type=jnp.float32)

    # Numerically stable softmax numerator; normalization deferred past the 2nd matmul.
    m = jnp.max(s, axis=-1, keepdims=True)
    e = jnp.exp(s - m)                                  # (Bb, Lq, Lk)
    l = jnp.sum(e, axis=-1, keepdims=True)              # softmax denominator

    # Dropout(p=0.5, training): zero dropped probs now; the 1/(1-p)=2 scale is folded
    # into the deferred normalization below.
    p = (e * keep).astype(jnp.bfloat16)

    acc = jnp.einsum("bqk,bkv->bqv", p, v.astype(jnp.bfloat16),
                     preferred_element_type=jnp.float32)

    # out = dropout(softmax(s)) @ v = ((e * keep) @ v) * (2 / l)
    o_ref[...] = (acc * (2.0 / l)).astype(o_ref.dtype)


def attention_dropout(query, key, value, *, seed=0, block_b=8):
    """query: (B, Lq, D), key: (B, Lk, D), value: (B, Lk, Dv) -> (B, Lq, Dv)."""
    B, Lq, D = query.shape
    Bk, Lk, Dk = key.shape
    Bv, Lkv, Dv = value.shape
    assert B == Bk == Bv and D == Dk and Lk == Lkv

    # Dropout keep-mask (Bernoulli keep-prob 0.5), generated with the portable JAX PRNG
    # outside the kernel (the TPU stateful PRNG primitives do not lower in interpret/CPU
    # mode and are unnecessary here).
    keep = jax.random.bernoulli(
        jax.random.PRNGKey(seed), 0.5, (B, Lq, Lk)).astype(jnp.float32)

    bb = min(block_b, B)
    grid = (pl.cdiv(B, bb),)

    flops = 2 * B * Lq * Lk * (D + Dv)
    bytes_accessed = 4 * (query.size + key.size + value.size + keep.size + B * Lq * Dv)
    cost = pl.CostEstimate(flops=flops,
                           transcendentals=B * Lq * Lk,
                           bytes_accessed=bytes_accessed)

    return pl.pallas_call(
        _attn_dropout_kernel,
        out_shape=jax.ShapeDtypeStruct((B, Lq, Dv), jnp.float32),
        grid=grid,
        in_specs=[
            pl.BlockSpec((bb, Lq, D), lambda i: (i, 0, 0)),
            pl.BlockSpec((bb, Lk, D), lambda i: (i, 0, 0)),
            pl.BlockSpec((bb, Lk, Dv), lambda i: (i, 0, 0)),
            pl.BlockSpec((bb, Lq, Lk), lambda i: (i, 0, 0)),
        ],
        out_specs=pl.BlockSpec((bb, Lq, Dv), lambda i: (i, 0, 0)),
        compiler_params=pltpu.CompilerParams(
            # Independent batch blocks -> shard across TensorCores on v7x; neutral on v5e/v6e.
            dimension_semantics=("parallel",),
        ),
        cost_estimate=cost,
    )(query, key, value, keep)


if __name__ == "__main__":
    # Small, consistent shapes: B=1, Lq=Lk=16, D=Dv=128.
    rng = jax.random.PRNGKey(0)
    kq, kk, kv = jax.random.split(rng, 3)
    query = jax.random.normal(kq, (1, 16, 128), dtype=jnp.float32)
    key = jax.random.normal(kk, (1, 16, 128), dtype=jnp.float32)
    value = jax.random.normal(kv, (1, 16, 128), dtype=jnp.float32)

    out = attention_dropout(query, key, value, seed=0)
    out = jax.block_until_ready(out)
    assert out.shape == (1, 16, 128) and out.dtype == jnp.float32
    assert bool(jnp.all(jnp.isfinite(out)))
    print("KERNEL_OK")
</pallas_src>

<mosaic_0001>
module attributes {stable_mosaic.version = 11 : i64} {
  func.func @_attn_dropout_kernel(%arg0: i32, %arg1: memref<1x16x128xf32, #tpu.memory_space<vmem>>, %arg2: memref<1x16x128xf32, #tpu.memory_space<vmem>>, %arg3: memref<1x16x128xf32, #tpu.memory_space<vmem>>, %arg4: memref<1x16x16xf32, #tpu.memory_space<vmem>>, %arg5: memref<1x16x128xf32, #tpu.memory_space<vmem>>) attributes {dimension_semantics = [#tpu.dimension_semantics<parallel>], iteration_bounds = array<i64: 1>, scalar_prefetch = 0 : i64, scratch_operands = 0 : i64, tpu.core_type = #tpu.core_type<tc>, window_params = [{transform_indices = @transform_0, window_bounds = array<i64: 1, 16, 128>}, {transform_indices = @transform_1, window_bounds = array<i64: 1, 16, 128>}, {transform_indices = @transform_2, window_bounds = array<i64: 1, 16, 128>}, {transform_indices = @transform_3, window_bounds = array<i64: 1, 16, 16>}, {transform_indices = @transform_4, window_bounds = array<i64: 1, 16, 128>}]} {
    %c0 = arith.constant 0 : index
    %c0_0 = arith.constant 0 : index
    %c0_1 = arith.constant 0 : index
    %0 = vector.load %arg1[%c0, %c0_0, %c0_1] : memref<1x16x128xf32, #tpu.memory_space<vmem>>, vector<1x16x128xf32>
    %c0_2 = arith.constant 0 : index
    %c0_3 = arith.constant 0 : index
    %c0_4 = arith.constant 0 : index
    %1 = vector.load %arg2[%c0_2, %c0_3, %c0_4] : memref<1x16x128xf32, #tpu.memory_space<vmem>>, vector<1x16x128xf32>
    %c0_5 = arith.constant 0 : index
    %c0_6 = arith.constant 0 : index
    %c0_7 = arith.constant 0 : index
    %2 = vector.load %arg3[%c0_5, %c0_6, %c0_7] : memref<1x16x128xf32, #tpu.memory_space<vmem>>, vector<1x16x128xf32>
    %c0_8 = arith.constant 0 : index
    %c0_9 = arith.constant 0 : index
    %c0_10 = arith.constant 0 : index
    %3 = vector.load %arg4[%c0_8, %c0_9, %c0_10] : memref<1x16x16xf32, #tpu.memory_space<vmem>>, vector<1x16x16xf32>
    %cst = arith.constant 4.000000e+00 : f32
    %4 = vector.broadcast %cst : f32 to vector<1x16x128xf32>
    %5 = arith.mulf %0, %4 : vector<1x16x128xf32>
    %6 = arith.truncf %5 : vector<1x16x128xf32> to vector<1x16x128xbf16>
    %7 = arith.truncf %1 : vector<1x16x128xf32> to vector<1x16x128xbf16>
    "tpu.trace_start"() <{level = 10 : i32, message = "bqd,bkd->bqk"}> : () -> ()
    %cst_11 = arith.constant dense<0.000000e+00> : vector<1x16x16xf32>
    %8 = tpu.matmul %6, %7, %cst_11 {dimension_numbers = #tpu.dot_dimension_numbers<[2], [2], [1], [1], [0, 0, 0, 1, 1, 1], [0], [0]>} : vector<1x16x128xbf16>, vector<1x16x128xbf16>, vector<1x16x16xf32> -> vector<1x16x16xf32>
    "tpu.trace_stop"() : () -> ()
    %cst_12 = arith.constant dense<0xFF800000> : vector<1x16xf32>
    %9 = vector.multi_reduction <maximumf>, %8, %cst_12 [2] : vector<1x16x16xf32> to vector<1x16xf32>
    %10 = vector.shape_cast %9 : vector<1x16xf32> to vector<1x16x1xf32>
    %11 = vector.broadcast %10 : vector<1x16x1xf32> to vector<1x16x16xf32>
    %12 = arith.subf %8, %11 : vector<1x16x16xf32>
    %13 = math.exp %12 : vector<1x16x16xf32>
    %cst_13 = arith.constant dense<0.000000e+00> : vector<1x16xf32>
    %14 = vector.multi_reduction <add>, %13, %cst_13 [2] : vector<1x16x16xf32> to vector<1x16xf32>
    %15 = vector.shape_cast %14 : vector<1x16xf32> to vector<1x16x1xf32>
    %16 = arith.mulf %13, %3 : vector<1x16x16xf32>
    %17 = arith.truncf %16 : vector<1x16x16xf32> to vector<1x16x16xbf16>
    %18 = arith.truncf %2 : vector<1x16x128xf32> to vector<1x16x128xbf16>
    "tpu.trace_start"() <{level = 10 : i32, message = "bqk,bkv->bqv"}> : () -> ()
    %cst_14 = arith.constant dense<0.000000e+00> : vector<1x16x128xf32>
    %19 = tpu.matmul %17, %18, %cst_14 {dimension_numbers = #tpu.dot_dimension_numbers<[2], [1], [1], [2], [0, 0, 0, 1, 1, 2], [0], [0]>} : vector<1x16x16xbf16>, vector<1x16x128xbf16>, vector<1x16x128xf32> -> vector<1x16x128xf32>
    "tpu.trace_stop"() : () -> ()
    %cst_15 = arith.constant 2.000000e+00 : f32
    %20 = vector.broadcast %cst_15 : f32 to vector<1x16x1xf32>
    %21 = arith.divf %20, %15 : vector<1x16x1xf32>
    %22 = vector.broadcast %21 : vector<1x16x1xf32> to vector<1x16x128xf32>
    %23 = arith.mulf %19, %22 : vector<1x16x128xf32>
    %c0_16 = arith.constant 0 : index
    %c0_17 = arith.constant 0 : index
    %c0_18 = arith.constant 0 : index
    %24 = vector.load %arg5[%c0_16, %c0_17, %c0_18] : memref<1x16x128xf32, #tpu.memory_space<vmem>>, vector<1x16x128xf32>
    tpu.vector_store %arg5[%c0_16, %c0_17, %c0_18], %23 {strides = array<i32>} : memref<1x16x128xf32, #tpu.memory_space<vmem>>, vector<1x16x128xf32>,
    return
  }
  func.func @transform_0(%arg0: i32) -> (i32, i32, i32) {
    %c0_i32 = arith.constant 0 : i32
    %c0_i32_0 = arith.constant 0 : i32
    %c0_i32_1 = arith.constant 0 : i32
    return %arg0, %c0_i32, %c0_i32_0 : i32, i32, i32
  }
  func.func @transform_1(%arg0: i32) -> (i32, i32, i32) {
    %c0_i32 = arith.constant 0 : i32
    %c0_i32_0 = arith.constant 0 : i32
    %c0_i32_1 = arith.constant 0 : i32
    return %arg0, %c0_i32, %c0_i32_0 : i32, i32, i32
  }
  func.func @transform_2(%arg0: i32) -> (i32, i32, i32) {
    %c0_i32 = arith.constant 0 : i32
    %c0_i32_0 = arith.constant 0 : i32
    %c0_i32_1 = arith.constant 0 : i32
    return %arg0, %c0_i32, %c0_i32_0 : i32, i32, i32
  }
  func.func @transform_3(%arg0: i32) -> (i32, i32, i32) {
    %c0_i32 = arith.constant 0 : i32
    %c0_i32_0 = arith.constant 0 : i32
    %c0_i32_1 = arith.constant 0 : i32
    return %arg0, %c0_i32, %c0_i32_0 : i32, i32, i32
  }
  func.func @transform_4(%arg0: i32) -> (i32, i32, i32) {
    %c0_i32 = arith.constant 0 : i32
    %c0_i32_0 = arith.constant 0 : i32
    %c0_i32_1 = arith.constant 0 : i32
    return %arg0, %c0_i32, %c0_i32_0 : i32, i32, i32
  }
}

</mosaic_0001>

<llo_original>
// kernel: tpu_custom_call.1
$region0: #{tpu_custom_call.1}
  #allocation0 [shape = 'u32[]', space=smem, size = 0x4, offset = 0x4, fixed_abs, tag = 'smem constant byte address 0x4 - core index']
  #allocation1 [shape = 'u32[72,128]{1,0:T(1,128)}', space=vmem, size = 0x9000, scoped, tag = 'internal scratch']
  %s0 = inlined_call_operand.hbm [shape: f32[1,16,128], index: 0, kind: input, shape index: {}]
  %s1 = inlined_call_operand.hbm [shape: f32[1,16,128], index: 1, kind: input, shape index: {}]
  %s2 = inlined_call_operand.hbm [shape: f32[1,16,128], index: 2, kind: input, shape index: {}]
  %s3 = inlined_call_operand.hbm [shape: f32[1,16,16], index: 3, kind: input, shape index: {}]
  %s4 = inlined_call_operand.hbm [shape: f32[1,16,128], index: 4, kind: output, shape index: {}]
  %s5 = sld [smem:[#allocation0]]
  $region42: #{tpu_custom_call.1} parent=0
    _
  %s7 = ssub.s32 1, %s5
  %s8 = scalar_select 0, %s7, %s5
  $region1: #{tpu_custom_call.1} parent=0
    #allocation2 [shape = 'u8[8192]{0}', space=vmem, size = 0x2000, scoped, tag = 'input window, operand 0, single buffered']
    #allocation3 [shape = 's32[1]{0}', space=sflag, size = 0x4, scoped, tag = 'scoped memory for tpu_custom_call.1']
    #allocation4 [shape = 's32[1]{0}', space=sflag, size = 0x4, scoped, tag = 'scoped memory for tpu_custom_call.1']
    #allocation5 [shape = 'u8[8192]{0}', space=vmem, size = 0x2000, scoped, tag = 'input window, operand 1, single buffered']
    #allocation6 [shape = 's32[1]{0}', space=sflag, size = 0x4, scoped, tag = 'scoped memory for tpu_custom_call.1']
    #allocation7 [shape = 'u8[8192]{0}', space=vmem, size = 0x2000, scoped, tag = 'input window, operand 2, single buffered']
    #allocation8 [shape = 'u8[8192]{0}', space=vmem, size = 0x2000, scoped, tag = 'input window, operand 3, single buffered']
    #allocation9 [shape = 's32[1]{0}', space=sflag, size = 0x4, scoped, tag = 'scoped memory for tpu_custom_call.1']
    #allocation10 [shape = 'u8[8192]{0}', space=vmem, size = 0x2000, scoped, tag = 'output window, operand 0, single buffered']
    %9 = vsyncpa [#allocation3], 0
    %10 = vsyncpa [#allocation6], 0
    %11 = vsyncpa [#allocation9], 0
    %12 = vsyncpa [#allocation4], 0
    // Predicated region
    $region2: #{tpu_custom_call.1} parent=1 // pred_check
      _
    $region3: #{tpu_custom_call.1} parent=1 // pred_check_branch
      %14 = sbr.rel (0) target = $region5
    $region4: #{tpu_custom_call.1} parent=1 // pred_region
      %16 = vsyncadd [#allocation3], 0
      %s17 = sshll.u32 %s0, 4
      %s18 = int_to_ptr.hbm [resolvable:$true] %s17
      %s19 = sshll.u32 [#allocation2], 4
      %s20 = int_to_ptr.vmem [resolvable:$true] %s19
      %25 = dma.hbm_to_vmem [thread:$0]  %s18, 256, %s20, [#allocation3], 128, 128, 8
    $region5: #{tpu_custom_call.1} parent=1 // pred_fallthru
      _
    // Predicated region
    $region6: #{tpu_custom_call.1} parent=1 // pred_check
      _
    $region7: #{tpu_custom_call.1} parent=1 // pred_check_branch
      %27 = sbr.rel (0) target = $region9
    $region8: #{tpu_custom_call.1} parent=1 // pred_region
      %29 = vsyncadd [#allocation6], 0
      %s30 = sshll.u32 %s1, 4
      %s31 = int_to_ptr.hbm [resolvable:$true] %s30
      %s32 = sshll.u32 [#allocation5], 4
      %s33 = int_to_ptr.vmem [resolvable:$true] %s32
      %38 = dma.hbm_to_vmem [thread:$0]  %s31, 256, %s33, [#allocation6], 128, 128, 8
    $region9: #{tpu_custom_call.1} parent=1 // pred_fallthru
      _
    // Predicated region
    $region10: #{tpu_custom_call.1} parent=1 // pred_check
      _
    $region11: #{tpu_custom_call.1} parent=1 // pred_check_branch
      %40 = sbr.rel (0) target = $region13
    $region12: #{tpu_custom_call.1} parent=1 // pred_region
      %42 = vsyncadd [#allocation6], 0
      %s43 = sshll.u32 %s2, 4
      %s44 = int_to_ptr.hbm [resolvable:$true] %s43
      %s45 = sshll.u32 [#allocation7], 4
      %s46 = int_to_ptr.vmem [resolvable:$true] %s45
      %51 = dma.hbm_to_vmem [thread:$0]  %s44, 256, %s46, [#allocation6], 128, 128, 8
    $region13: #{tpu_custom_call.1} parent=1 // pred_fallthru
      _
    // Predicated region
    $region14: #{tpu_custom_call.1} parent=1 // pred_check
      _
    $region15: #{tpu_custom_call.1} parent=1 // pred_check_branch
      %53 = sbr.rel (0) target = $region17
    $region16: #{tpu_custom_call.1} parent=1 // pred_region
      %55 = vsyncadd [#allocation9], 0
      %s56 = sshll.u32 %s3, 4
      %s57 = int_to_ptr.hbm [resolvable:$true] %s56
      %s58 = sshll.u32 [#allocation8], 4
      %s59 = int_to_ptr.vmem [resolvable:$true] %s58
      %64 = dma.hbm_to_vmem [thread:$0]  %s57, 256, %s59, [#allocation9], 128, 128, 8
    $region17: #{tpu_custom_call.1} parent=1 // pred_fallthru
      _
    // Predicated region
    $region18: #{tpu_custom_call.1} parent=1 // pred_check
      _
    $region19: #{tpu_custom_call.1} parent=1 // pred_check_branch
      %66 = sbr.rel (0) target = $region21
    $region20: #{tpu_custom_call.1} parent=1 // pred_region
      %68 = dma.done [#allocation3], 256
    $region21: #{tpu_custom_call.1} parent=1 // pred_fallthru
      _
    // Predicated region
    $region22: #{tpu_custom_call.1} parent=1 // pred_check
      _
    $region23: #{tpu_custom_call.1} parent=1 // pred_check_branch
      %70 = sbr.rel (0) target = $region25
    $region24: #{tpu_custom_call.1} parent=1 // pred_region
      %72 = dma.done [#allocation6], 256
    $region25: #{tpu_custom_call.1} parent=1 // pred_fallthru
      _
    // Predicated region
    $region26: #{tpu_custom_call.1} parent=1 // pred_check
      _
    $region27: #{tpu_custom_call.1} parent=1 // pred_check_branch
      %74 = sbr.rel (0) target = $region29
    $region28: #{tpu_custom_call.1} parent=1 // pred_region
      %76 = dma.done [#allocation6], 256
    $region29: #{tpu_custom_call.1} parent=1 // pred_fallthru
      _
    // Predicated region
    $region30: #{tpu_custom_call.1} parent=1 // pred_check
      _
    $region31: #{tpu_custom_call.1} parent=1 // pred_check_branch
      %78 = sbr.rel (0) target = $region33
    $region32: #{tpu_custom_call.1} parent=1 // pred_region
      %80 = dma.done [#allocation9], 256
    $region33: #{tpu_custom_call.1} parent=1 // pred_fallthru
      _
    %v82 = vld [vmem:[#allocation2] sm:$0xff]
    %v83 = vld [vmem:[#allocation2 + $0x8] sm:$0xff]
    %v84 = vld [vmem:[#allocation5] sm:$0xff]
    %v85 = vld [vmem:[#allocation5 + $0x8] sm:$0xff]
    %v86 = vld [vmem:[#allocation7] sm:$0xff]
    %v87 = vld [vmem:[#allocation7 + $0x8] sm:$0xff]
    %v88 = vld [vmem:[#allocation8] sm:$0xff]
    %v89 = vld [vmem:[#allocation8 + $0x8] sm:$0xff]
    %v90 = vmul.f32 %v82, 4.0
    %v91 = vmul.f32 %v83, 4.0
    %v92 = vpack.c.bf16 %v90, %v90
    %v93 = vpack.c.bf16 %v91, %v91
    %v94 = vpack.c.bf16 %v84, %v84
    %v95 = vpack.c.bf16 %v85, %v85
    %v98 = vunpack.c.l.b16 %v92
    %v99 = vunpack.c.l.b16 %v93
    %v100 = vpack.c.b16 %v99, %v98
    %v104 = vunpack.c.l.b16 %v94
    %v105 = vunpack.c.l.b16 %v95
    %v106 = vpack.c.b16 %v105, %v104
    %108 = vmatpush.bf16.xpose.msra.mxu0 0
    %109 = vmatpush.bf16.xpose.msra.mxu0 0
    %110 = vmatpush.bf16.xpose.msra.mxu0 0
    %111 = vmatpush.bf16.xpose.msra.mxu0 0
    %112 = vmatpush.bf16.xpose.msra.mxu0 0
    %113 = vmatpush.bf16.xpose.msra.mxu0 0
    %114 = vmatpush.bf16.xpose.msra.mxu0 0
    %115 = vmatpush.bf16.xpose.msra.mxu0 %v106
    %116 = vmatmul.bf16.gmra.mxu0 %v100
    %v117 = vpop.f32.mrf.mxu0
    %v118 = vadd.f32 0.0, %v117
    %v119 = vpop.f32.mrf.mxu0
    %v120 = vadd.f32 0.0, %v119
    %121 = vdwg.mxu0
    %vm122 = vcmask 130048
    %v123 = vsel %vm122, %v118, -inf
    %124 = vmax.xlane.f32.xlu0 %v123
    %v125 = vpop.xlane.xlu0 %124
    %v126 = vsel %vm122, %v120, -inf
    %127 = vmax.xlane.f32.xlu0 %v126
    %v128 = vpop.xlane.xlu0 %127
    %v129 = vsub.f32 %v118, %v125
    %v130 = vsub.f32 %v120, %v128
    %v131 = vmul.f32 %v129, 1.442695
    %v132 = vpow.pop %v131
    %v133 = vmul.f32 %v130, 1.442695
    %v134 = vpow.pop %v133
    %v135 = vsel %vm122, %v132, 0.0
    %136 = vadd.xlane.f32.xlu0 %v135
    %v137 = vpop.xlane.xlu0 %136
    %v138 = vsel %vm122, %v134, 0.0
    %139 = vadd.xlane.f32.xlu0 %v138
    %v140 = vpop.xlane.xlu0 %139
    %v141 = vmul.f32 %v132, %v88
    %v142 = vmul.f32 %v134, %v89
    %v143 = vpack.c.bf16 %v141, %v141
    %v144 = vpack.c.bf16 %v142, %v142
    %v145 = vpack.c.bf16 %v86, %v86
    %v146 = vpack.c.bf16 %v87, %v87
    %v149 = vunpack.c.l.b16 %v143
    %v150 = vunpack.c.l.b16 %v144
    %v151 = vpack.c.b16 %v150, %v149
    %v154 = vunpack.c.l.b16 %v145
    %v155 = vunpack.c.l.b16 %v146
    %v156 = vpack.c.b16 %v155, %v154
    %v159 = vsel %vm122, %v151, 0
    %161 = vmatpush.bf16.msra.mxu0 0
    %162 = vmatpush.bf16.msra.mxu0 0
    %163 = vmatpush.bf16.msra.mxu0 0
    %164 = vmatpush.bf16.msra.mxu0 0
    %165 = vmatpush.bf16.msra.mxu0 0
    %166 = vmatpush.bf16.msra.mxu0 0
    %167 = vmatpush.bf16.msra.mxu0 0
    %168 = vmatpush.bf16.msra.mxu0 %v156
    %169 = vmatmul.bf16.gmra.mxu0 %v159
    %v170 = vpop.f32.mrf.mxu0
    %v171 = vadd.f32 0.0, %v170
    %v172 = vpop.f32.mrf.mxu0
    %v173 = vadd.f32 0.0, %v172
    %174 = vdwg.mxu0
    %v175 = vrcp.pop %v137
    %v176 = vmul.f32 %v137, %v175
    %v177 = vsub.f32 1.0, %v176
    %v178 = vmul.f32 %v175, %v177
    %v179 = vadd.f32 %v175, %v178
    %vm180 = vweird.f32 %v137
    %vm181 = vweird.f32 %v175
    %vm182 = vmor %vm180, %vm181
    %v183 = vsel %vm182, %v175, %v179
    %v184 = vand.u32 2147483647, %v137
    %vm185 = vcmp.eq.f32.partialorder %v184, 8.507059e+37
    %v186 = vand.u32 %v137, 2147483648
    %v187 = vor.u32 1.1754944e-38, %v186
    %v188 = vsel %vm185, %v187, %v183
    %v189 = vmul.f32 2.0, %v188
    %v190 = vrcp.pop %v140
    %v191 = vmul.f32 %v140, %v190
    %v192 = vsub.f32 1.0, %v191
    %v193 = vmul.f32 %v190, %v192
    %v194 = vadd.f32 %v190, %v193
    %vm195 = vweird.f32 %v140
    %vm196 = vweird.f32 %v190
    %vm197 = vmor %vm195, %vm196
    %v198 = vsel %vm197, %v190, %v194
    %v199 = vand.u32 2147483647, %v140
    %vm200 = vcmp.eq.f32.partialorder %v199, 8.507059e+37
    %v201 = vand.u32 %v140, 2147483648
    %v202 = vor.u32 1.1754944e-38, %v201
    %v203 = vsel %vm200, %v202, %v198
    %v204 = vmul.f32 2.0, %v203
    %v205 = vmul.f32 %v171, %v189
    %v206 = vmul.f32 %v173, %v204
    %207 = vst [vmem:[#allocation10] sm:$0xff] %v205
    %208 = vst [vmem:[#allocation10 + $0x8] sm:$0xff] %v206
    // Predicated region
    $region34: #{tpu_custom_call.1} parent=1 // pred_check
      _
    $region35: #{tpu_custom_call.1} parent=1 // pred_check_branch
      %210 = sbr.rel (0) target = $region37
    $region36: #{tpu_custom_call.1} parent=1 // pred_region
      %212 = vsyncadd [#allocation4], 0
      %s213 = sshll.u32 [#allocation10], 4
      %s214 = int_to_ptr.vmem [resolvable:$true] %s213
      %s215 = sshll.u32 %s4, 4
      %s216 = int_to_ptr.hbm [resolvable:$true] %s215
      %221 = dma.vmem_to_hbm [thread:$0]  %s214, 256, %s216, [#allocation4], 128, 128, 8
    $region37: #{tpu_custom_call.1} parent=1 // pred_fallthru
      _
    // Predicated region
    $region38: #{tpu_custom_call.1} parent=1 // pred_check
      _
    $region39: #{tpu_custom_call.1} parent=1 // pred_check_branch
      %223 = sbr.rel (0) target = $region41
    $region40: #{tpu_custom_call.1} parent=1 // pred_region
      %225 = dma.done [#allocation4], 256
    $region41: #{tpu_custom_call.1} parent=1 // pred_fallthru
      _
    %226 = vsyncpa [#allocation3], 1
    %227 = vsyncpa [#allocation6], 1
    %228 = vsyncpa [#allocation9], 1
    %229 = vsyncpa [#allocation4], 1

</llo_original>
